<compile_context>
chip_gen: v7x
topology: tpu7x:2x2x1
jax: 0.10.0
libtpu: 0.0.40
codegen_flags: <defaults>
</compile_context>

<pallas_src>
import functools

import jax
import jax.numpy as jnp
from jax.experimental import pallas as pl
from jax.experimental.pallas import tpu as pltpu


def _attention_kernel(v_ref, qp_ref, wvt_ref, wxt_ref, bx_ref, o_ref):
    """One grid step = `B` batch elements, channel-major layout.

    v_ref:   (B, Cv, HW)  MXU-operand dtype (f32 or bf16)
    qp_ref:  (B, M, 1)    f32, q @ wq + bq precomputed in the wrapper
    wvt_ref: (M, Cv)      v_conv weight, transposed for left-multiplication
    wxt_ref: (G, M)       x_conv weight, transposed
    bx_ref:  (G, 1)       x_conv bias (column -> broadcasts over lanes)
    o_ref:   (B, G, HW)
    """
    wvt = wvt_ref[...]
    wxt = wxt_ref[...]
    bx = bx_ref[...]
    for b in range(v_ref.shape[0]):  # static, small unrolled loop
        # v_conv (1x1, no bias): (M, Cv) @ (Cv, HW) -> (M, HW), f32 accumulation.
        v_proj = jnp.dot(wvt, v_ref[b], preferred_element_type=jnp.float32)
        # tile_2d_over_nd + relu(v + q): broadcast q over all spatial lanes (f32).
        x = jnp.maximum(v_proj + qp_ref[b], 0.0)
        # x_conv (1x1, with bias): (G, M) @ (M, HW) -> (G, HW); lane-dense store.
        out = jnp.dot(wxt, x.astype(wxt.dtype),
                      preferred_element_type=jnp.float32) + bx
        o_ref[b] = out.astype(o_ref.dtype)


def attention_forward(v_nchw, q, wv, wq, bq, wx, bx, *,
                      operand_dtype=jnp.float32, batch_block=None):
    """v_nchw: (N, Cv, H, W), q: (N, Cq).  Weights stored as (in, out):
    wv: (Cv, M), wq: (Cq, M), bq: (M,), wx: (M, G), bx: (G,).
    Returns (N, G, H, W)."""
    N, Cv, H, W = v_nchw.shape
    M = wv.shape[1]
    G = wx.shape[1]
    HW = H * W

    if batch_block is None:
        # Largest divisor of N that still leaves >= 2 grid steps (keeps both
        # TensorCores busy on v7x) while keeping the double-buffered VMEM
        # footprint small.
        batch_block = 1
        for cand in range(min(max(N // 2, 1), 8), 0, -1):
            if N % cand == 0:
                batch_block = cand
                break
    assert N % batch_block == 0, (N, batch_block)

    # Channel-major: NCHW -> (N, Cv, HW) is a pure reshape, no HBM transpose.
    v_cm = v_nchw.reshape(N, Cv, HW).astype(operand_dtype)
    # Hoist q_lin out of the kernel; keep it (and all elementwise math) in f32.
    q_proj = (q @ wq + bq).astype(jnp.float32).reshape(N, M, 1)
    wvt = wv.T.astype(operand_dtype)                  # (M, Cv)
    wxt = wx.T.astype(operand_dtype)                  # (G, M)
    bxc = bx.astype(jnp.float32).reshape(G, 1)        # (G, 1)

    grid = (N // batch_block,)

    out_cm = pl.pallas_call(
        _attention_kernel,
        out_shape=jax.ShapeDtypeStruct((N, G, HW), v_nchw.dtype),
        grid_spec=pltpu.PrefetchScalarGridSpec(
            num_scalar_prefetch=0,
            grid=grid,
            in_specs=[
                pl.BlockSpec((batch_block, Cv, HW), lambda n: (n, 0, 0)),  # v
                pl.BlockSpec((batch_block, M, 1), lambda n: (n, 0, 0)),    # q_proj
                pl.BlockSpec((M, Cv), lambda n: (0, 0)),                   # wv^T
                pl.BlockSpec((G, M), lambda n: (0, 0)),                    # wx^T
                pl.BlockSpec((G, 1), lambda n: (0, 0)),                    # bx
            ],
            out_specs=pl.BlockSpec((batch_block, G, HW), lambda n: (n, 0, 0)),
        ),
        compiler_params=pltpu.CompilerParams(
            dimension_semantics=("parallel",)),
    )(v_cm, q_proj, wvt, wxt, bxc)

    # (N, G, HW) -> (N, G, H, W): pure reshape, no transpose.
    return out_cm.reshape(N, G, H, W)


def _reference(v_nchw, q, wv, wq, bq, wx, bx, operand_dtype=jnp.float32):
    """Pure-JAX reference matching the PyTorch semantics (optionally with the
    same bf16 MXU-operand / f32-accumulation precision as the kernel)."""
    N, Cv, H, W = v_nchw.shape
    v_flat = jnp.transpose(v_nchw, (0, 2, 3, 1)).reshape(N, H * W, Cv)
    v_proj = jnp.einsum("nlc,cm->nlm", v_flat.astype(operand_dtype),
                        wv.astype(operand_dtype),
                        preferred_element_type=jnp.float32)
    q_proj = q @ wq + bq                                  # (N, M), f32
    x = jax.nn.relu(v_proj + q_proj[:, None, :]).astype(operand_dtype)
    out = jnp.einsum("nlm,mg->nlg", x, wx.astype(operand_dtype),
                     preferred_element_type=jnp.float32) + bx
    return jnp.transpose(out.reshape(N, H, W, -1), (0, 3, 1, 2)).astype(v_nchw.dtype)


if __name__ == "__main__":
    # Module hyperparameters (small, consistent with the forward pass).
    N, H, W = 4, 16, 16                       # HW = 256 -> lane-dense stores
    v_features, q_features, mid_features, glimpses = 32, 16, 32, 2

    key = jax.random.PRNGKey(0)
    k_v, k_q, k_wv, k_wq, k_bq, k_wx, k_bx = jax.random.split(key, 7)

    # Inputs
    v = jax.random.normal(k_v, (N, v_features, H, W), jnp.float32)
    q = jax.random.normal(k_q, (N, q_features), jnp.float32)

    # Deterministic parameter init (shapes match nn.Conv2d(1x1) / nn.Linear).
    # Stored already transposed for right-multiplication: (in, out).
    wv = jax.random.normal(k_wv, (v_features, mid_features), jnp.float32) * 0.1   # v_conv.weight (no bias)
    wq = jax.random.normal(k_wq, (q_features, mid_features), jnp.float32) * 0.1   # q_lin.weight
    bq = jax.random.normal(k_bq, (mid_features,), jnp.float32) * 0.1              # q_lin.bias
    wx = jax.random.normal(k_wx, (mid_features, glimpses), jnp.float32) * 0.1     # x_conv.weight
    bx = jax.random.normal(k_bx, (glimpses,), jnp.float32) * 0.1                  # x_conv.bias

    # f32 path: exact check against the PyTorch-semantics reference.
    fwd_f32 = jax.jit(attention_forward)
    out_f32 = jax.block_until_ready(fwd_f32(v, q, wv, wq, bq, wx, bx))
    ref_f32 = _reference(v, q, wv, wq, bq, wx, bx)
    assert out_f32.shape == (N, glimpses, H, W), out_f32.shape
    assert jnp.allclose(out_f32, ref_f32, atol=1e-4, rtol=1e-4), "f32 mismatch vs reference"

    # bf16 MXU-operand path (f32 accumulation, f32 elementwise): check against
    # the precision-matched reference.
    fwd_bf16 = jax.jit(functools.partial(attention_forward,
                                         operand_dtype=jnp.bfloat16))
    out_bf16 = jax.block_until_ready(fwd_bf16(v, q, wv, wq, bq, wx, bx))
    ref_bf16 = _reference(v, q, wv, wq, bq, wx, bx, operand_dtype=jnp.bfloat16)
    assert out_bf16.shape == (N, glimpses, H, W), out_bf16.shape
    assert jnp.allclose(out_bf16, ref_bf16, atol=5e-3, rtol=5e-3), "bf16 mismatch vs reference"

    print("KERNEL_OK")
</pallas_src>

<mosaic_0001>
module attributes {stable_mosaic.version = 11 : i64} {
  func.func @_attention_kernel(%arg0: i32, %arg1: memref<2x32x256xf32, #tpu.memory_space<vmem>>, %arg2: memref<2x32x1xf32, #tpu.memory_space<vmem>>, %arg3: memref<32x32xf32, #tpu.memory_space<vmem>>, %arg4: memref<2x32xf32, #tpu.memory_space<vmem>>, %arg5: memref<2x1xf32, #tpu.memory_space<vmem>>, %arg6: memref<2x2x256xf32, #tpu.memory_space<vmem>>) attributes {dimension_semantics = [#tpu.dimension_semantics<parallel>], iteration_bounds = array<i64: 2>, scalar_prefetch = 0 : i64, scratch_operands = 0 : i64, tpu.core_type = #tpu.core_type<tc>, window_params = [{transform_indices = @transform_0, window_bounds = array<i64: 2, 32, 256>}, {transform_indices = @transform_1, window_bounds = array<i64: 2, 32, 1>}, {pipeline_mode = #tpu.pipeline_mode<synchronous>, transform_indices = @transform_2, window_bounds = array<i64: 32, 32>}, {pipeline_mode = #tpu.pipeline_mode<synchronous>, transform_indices = @transform_3, window_bounds = array<i64: 2, 32>}, {pipeline_mode = #tpu.pipeline_mode<synchronous>, transform_indices = @transform_4, window_bounds = array<i64: 2, 1>}, {transform_indices = @transform_5, window_bounds = array<i64: 2, 2, 256>}]} {
    %c0 = arith.constant 0 : index
    %c0_0 = arith.constant 0 : index
    %0 = vector.load %arg3[%c0, %c0_0] : memref<32x32xf32, #tpu.memory_space<vmem>>, vector<32x32xf32>
    %c0_1 = arith.constant 0 : index
    %c0_2 = arith.constant 0 : index
    %1 = vector.load %arg4[%c0_1, %c0_2] : memref<2x32xf32, #tpu.memory_space<vmem>>, vector<2x32xf32>
    %c0_3 = arith.constant 0 : index
    %c0_4 = arith.constant 0 : index
    %2 = vector.load %arg5[%c0_3, %c0_4] : memref<2x1xf32, #tpu.memory_space<vmem>>, vector<2x1xf32>
    %c0_5 = arith.constant 0 : index
    %c0_6 = arith.constant 0 : index
    %c0_7 = arith.constant 0 : index
    %3 = vector.load %arg1[%c0_5, %c0_6, %c0_7] : memref<2x32x256xf32, #tpu.memory_space<vmem>>, vector<1x32x256xf32>
    %4 = vector.shape_cast %3 : vector<1x32x256xf32> to vector<32x256xf32>
    %cst = arith.constant dense<0.000000e+00> : vector<32x256xf32>
    %5 = tpu.matmul %0, %4, %cst {dimension_numbers = #tpu.dot_dimension_numbers<[1], [0], [0], [1], [0, 0, 1, 1], [], []>} : vector<32x32xf32>, vector<32x256xf32>, vector<32x256xf32> -> vector<32x256xf32>
    %c0_8 = arith.constant 0 : index
    %c0_9 = arith.constant 0 : index
    %c0_10 = arith.constant 0 : index
    %6 = vector.load %arg2[%c0_8, %c0_9, %c0_10] : memref<2x32x1xf32, #tpu.memory_space<vmem>>, vector<1x32x1xf32>
    %7 = vector.shape_cast %6 : vector<1x32x1xf32> to vector<32x1xf32>
    %8 = vector.broadcast %7 : vector<32x1xf32> to vector<32x256xf32>
    %9 = arith.addf %5, %8 : vector<32x256xf32>
    %cst_11 = arith.constant 0.000000e+00 : f32
    %10 = vector.broadcast %cst_11 : f32 to vector<32x256xf32>
    %11 = arith.maximumf %9, %10 : vector<32x256xf32>
    %cst_12 = arith.constant dense<0.000000e+00> : vector<2x256xf32>
    %12 = tpu.matmul %1, %11, %cst_12 {dimension_numbers = #tpu.dot_dimension_numbers<[1], [0], [0], [1], [0, 0, 1, 1], [], []>} : vector<2x32xf32>, vector<32x256xf32>, vector<2x256xf32> -> vector<2x256xf32>
    %13 = vector.broadcast %2 : vector<2x1xf32> to vector<2x256xf32>
    %14 = arith.addf %12, %13 : vector<2x256xf32>
    %c0_13 = arith.constant 0 : index
    %c0_14 = arith.constant 0 : index
    %c0_15 = arith.constant 0 : index
    %15 = vector.load %arg6[%c0_13, %c0_14, %c0_15] : memref<2x2x256xf32, #tpu.memory_space<vmem>>, vector<1x2x256xf32>
    %16 = vector.shape_cast %15 : vector<1x2x256xf32> to vector<2x256xf32>
    %17 = vector.shape_cast %14 : vector<2x256xf32> to vector<1x2x256xf32>
    tpu.vector_store %arg6[%c0_13, %c0_14, %c0_15], %17 {strides = array<i32>} : memref<2x2x256xf32, #tpu.memory_space<vmem>>, vector<1x2x256xf32>,
    %c1 = arith.constant 1 : index
    %c0_16 = arith.constant 0 : index
    %c0_17 = arith.constant 0 : index
    %18 = vector.load %arg1[%c1, %c0_16, %c0_17] : memref<2x32x256xf32, #tpu.memory_space<vmem>>, vector<1x32x256xf32>
    %19 = vector.shape_cast %18 : vector<1x32x256xf32> to vector<32x256xf32>
    %cst_18 = arith.constant dense<0.000000e+00> : vector<32x256xf32>
    %20 = tpu.matmul %0, %19, %cst_18 {dimension_numbers = #tpu.dot_dimension_numbers<[1], [0], [0], [1], [0, 0, 1, 1], [], []>} : vector<32x32xf32>, vector<32x256xf32>, vector<32x256xf32> -> vector<32x256xf32>
    %c1_19 = arith.constant 1 : index
    %c0_20 = arith.constant 0 : index
    %c0_21 = arith.constant 0 : index
    %21 = vector.load %arg2[%c1_19, %c0_20, %c0_21] : memref<2x32x1xf32, #tpu.memory_space<vmem>>, vector<1x32x1xf32>
    %22 = vector.shape_cast %21 : vector<1x32x1xf32> to vector<32x1xf32>
    %23 = vector.broadcast %22 : vector<32x1xf32> to vector<32x256xf32>
    %24 = arith.addf %20, %23 : vector<32x256xf32>
    %cst_22 = arith.constant 0.000000e+00 : f32
    %25 = vector.broadcast %cst_22 : f32 to vector<32x256xf32>
    %26 = arith.maximumf %24, %25 : vector<32x256xf32>
    %cst_23 = arith.constant dense<0.000000e+00> : vector<2x256xf32>
    %27 = tpu.matmul %1, %26, %cst_23 {dimension_numbers = #tpu.dot_dimension_numbers<[1], [0], [0], [1], [0, 0, 1, 1], [], []>} : vector<2x32xf32>, vector<32x256xf32>, vector<2x256xf32> -> vector<2x256xf32>
    %28 = vector.broadcast %2 : vector<2x1xf32> to vector<2x256xf32>
    %29 = arith.addf %27, %28 : vector<2x256xf32>
    %c1_24 = arith.constant 1 : index
    %c0_25 = arith.constant 0 : index
    %c0_26 = arith.constant 0 : index
    %30 = vector.load %arg6[%c1_24, %c0_25, %c0_26] : memref<2x2x256xf32, #tpu.memory_space<vmem>>, vector<1x2x256xf32>
    %31 = vector.shape_cast %30 : vector<1x2x256xf32> to vector<2x256xf32>
    %32 = vector.shape_cast %29 : vector<2x256xf32> to vector<1x2x256xf32>
    tpu.vector_store %arg6[%c1_24, %c0_25, %c0_26], %32 {strides = array<i32>} : memref<2x2x256xf32, #tpu.memory_space<vmem>>, vector<1x2x256xf32>,
    return
  }
  func.func @transform_0(%arg0: i32) -> (i32, i32, i32) {
    %c0_i32 = arith.constant 0 : i32
    %c0_i32_0 = arith.constant 0 : i32
    %c0_i32_1 = arith.constant 0 : i32
    return %arg0, %c0_i32, %c0_i32_0 : i32, i32, i32
  }
  func.func @transform_1(%arg0: i32) -> (i32, i32, i32) {
    %c0_i32 = arith.constant 0 : i32
    %c0_i32_0 = arith.constant 0 : i32
    %c0_i32_1 = arith.constant 0 : i32
    return %arg0, %c0_i32, %c0_i32_0 : i32, i32, i32
  }
  func.func @transform_2(%arg0: i32) -> (i32, i32) {
    %c0_i32 = arith.constant 0 : i32
    %c0_i32_0 = arith.constant 0 : i32
    %c0_i32_1 = arith.constant 0 : i32
    return %c0_i32, %c0_i32_0 : i32, i32
  }
  func.func @transform_3(%arg0: i32) -> (i32, i32) {
    %c0_i32 = arith.constant 0 : i32
    %c0_i32_0 = arith.constant 0 : i32
    %c0_i32_1 = arith.constant 0 : i32
    return %c0_i32, %c0_i32_0 : i32, i32
  }
  func.func @transform_4(%arg0: i32) -> (i32, i32) {
    %c0_i32 = arith.constant 0 : i32
    %c0_i32_0 = arith.constant 0 : i32
    %c0_i32_1 = arith.constant 0 : i32
    return %c0_i32, %c0_i32_0 : i32, i32
  }
  func.func @transform_5(%arg0: i32) -> (i32, i32, i32) {
    %c0_i32 = arith.constant 0 : i32
    %c0_i32_0 = arith.constant 0 : i32
    %c0_i32_1 = arith.constant 0 : i32
    return %arg0, %c0_i32, %c0_i32_0 : i32, i32, i32
  }
}

</mosaic_0001>

<llo_original>
// kernel: attention_forward.1
$region0: #{attention_forward.1}
  #allocation0 [shape = 'u32[]', space=smem, size = 0x4, offset = 0x4, fixed_abs, tag = 'smem constant byte address 0x4 - core index']
  #allocation1 [shape = 'u32[144,128]{1,0:T(1,128)}', space=vmem, size = 0x12000, scoped, tag = 'internal scratch']
  %s0 = inlined_call_operand.vmem [shape: f32[4,32,256], index: 0, kind: input, shape index: {}]
  %s1 = inlined_call_operand.vmem [shape: f32[4,32,1], index: 1, kind: input, shape index: {}]
  %s2 = inlined_call_operand.vmem [shape: f32[32,32], index: 2, kind: input, shape index: {}]
  %s3 = inlined_call_operand.vmem [shape: f32[2,32], index: 3, kind: input, shape index: {}]
  %s4 = inlined_call_operand.vmem [shape: f32[2,1], index: 4, kind: input, shape index: {}]
  %s5 = inlined_call_operand.vmem [shape: f32[4,2,256], index: 5, kind: output, shape index: {}]
  %s6 = sld [smem:[#allocation0]]
  $region53: #{attention_forward.1} parent=0
    _
  %s8 = ssub.s32 1, %s6
  %s9 = scalar_select 0, %s8, %s6
  loop: start=0, step=1, limit=4
  $region2: #{attention_forward.1} parent=0 // loop_pre_header
    _
  $region3: #{attention_forward.1} parent=0 // loop_header
    %s11 = sphi 0, %s15
    %p12 = scmp.ge.s32.totalorder %s11, 4
    %s21 = sphi 0, %s23
    %s24 = sphi 0, %s21
    %s25 = sphi 0, %s24
    %s41 = sphi 0, %s25
    %s47 = sphi 0, %s49
    %s50 = sphi 0, %s47
    %s51 = sphi 0, %s50
    %s67 = sphi 0, %s51
    %s71 = sphi 0, %s71
    %s73 = sphi 0, %s71
    %s74 = sphi 0, %s73
    %s88 = sphi 0, %s74
    %s92 = sphi 0, %s92
    %s94 = sphi 0, %s92
    %s95 = sphi 0, %s94
    %s109 = sphi 0, %s95
    %s113 = sphi 0, %s113
    %s115 = sphi 0, %s113
    %s116 = sphi 0, %s115
    %s130 = sphi 0, %s116
    %s136 = sphi 0, %s138
    %s139 = sphi 0, %s136
    %s140 = sphi 0, %s139
    %s156 = sphi 0, %s140
  $region4: #{attention_forward.1} parent=0 // loop_header_branch
    %14 = sbr.rel (%p12) target = $region8
  $region5: #{attention_forward.1} parent=0 // loop_body
    %s16 = ssub.s32 %s11, 1
    %s17 = ssub.s32 %s11, 2
    %s18 = sadd.s32 %s11, 1
    %s19 = ssub.s32 %s11, %s18
    %p20 = scmp.eq.s32.totalorder %s19, 0
    %s22 = sadd.s32 %s21, 1
    %s23 = scalar_select %p20, %s21, %s22
    %p26 = pneg %p20
    %p27 = scmp.eq.s32.totalorder %s11, 1
    %p28 = por %p26, %p27
    %p29 = scmp.ne.s32.totalorder %s21, %s24
    %p30 = scmp.eq.s32.totalorder %s11, 0
    %p31 = por %p29, %p30
    %p32 = scmp.ne.s32.totalorder %s21, %s24
    %p33 = scmp.eq.s32.totalorder %s16, 1
    %p34 = por %p32, %p33
    %p35 = scmp.ne.s32.totalorder %s24, %s25
    %p36 = scmp.eq.s32.totalorder %s16, 0
    %p37 = por %p35, %p36
    %p38 = scmp.ne.s32.totalorder %s24, %s25
    %p39 = scmp.eq.s32.totalorder %s17, 1
    %p40 = por %p38, %p39
    %p42 = scmp.ne.s32.totalorder %s25, %s41
    %p43 = scmp.eq.s32.totalorder %s17, 0
    %p44 = por %p42, %p43
    %s45 = ssub.s32 %s11, %s18
    %p46 = scmp.eq.s32.totalorder %s45, 0
    %s48 = sadd.s32 %s47, 1
    %s49 = scalar_select %p46, %s47, %s48
    %p52 = pneg %p46
    %p53 = scmp.eq.s32.totalorder %s11, 1
    %p54 = por %p52, %p53
    %p55 = scmp.ne.s32.totalorder %s47, %s50
    %p56 = scmp.eq.s32.totalorder %s11, 0
    %p57 = por %p55, %p56
    %p58 = scmp.ne.s32.totalorder %s47, %s50
    %p59 = scmp.eq.s32.totalorder %s16, 1
    %p60 = por %p58, %p59
    %p61 = scmp.ne.s32.totalorder %s50, %s51
    %p62 = scmp.eq.s32.totalorder %s16, 0
    %p63 = por %p61, %p62
    %p64 = scmp.ne.s32.totalorder %s50, %s51
    %p65 = scmp.eq.s32.totalorder %s17, 1
    %p66 = por %p64, %p65
    %p68 = scmp.ne.s32.totalorder %s51, %s67
    %p69 = scmp.eq.s32.totalorder %s17, 0
    %p70 = por %p68, %p69
    %s72 = sadd.s32 %s71, 1
    %p75 = scmp.eq.s32.totalorder %s11, 1
    %p76 = scmp.ne.s32.totalorder %s71, %s73
    %p77 = scmp.eq.s32.totalorder %s11, 0
    %p78 = por %p76, %p77
    %p79 = scmp.ne.s32.totalorder %s71, %s73
    %p80 = scmp.eq.s32.totalorder %s16, 1
    %p81 = por %p79, %p80
    %p82 = scmp.ne.s32.totalorder %s73, %s74
    %p83 = scmp.eq.s32.totalorder %s16, 0
    %p84 = por %p82, %p83
    %p85 = scmp.ne.s32.totalorder %s73, %s74
    %p86 = scmp.eq.s32.totalorder %s17, 1
    %p87 = por %p85, %p86
    %p89 = scmp.ne.s32.totalorder %s74, %s88
    %p90 = scmp.eq.s32.totalorder %s17, 0
    %p91 = por %p89, %p90
    %s93 = sadd.s32 %s92, 1
    %p96 = scmp.eq.s32.totalorder %s11, 1
    %p97 = scmp.ne.s32.totalorder %s92, %s94
    %p98 = scmp.eq.s32.totalorder %s11, 0
    %p99 = por %p97, %p98
    %p100 = scmp.ne.s32.totalorder %s92, %s94
    %p101 = scmp.eq.s32.totalorder %s16, 1
    %p102 = por %p100, %p101
    %p103 = scmp.ne.s32.totalorder %s94, %s95
    %p104 = scmp.eq.s32.totalorder %s16, 0
    %p105 = por %p103, %p104
    %p106 = scmp.ne.s32.totalorder %s94, %s95
    %p107 = scmp.eq.s32.totalorder %s17, 1
    %p108 = por %p106, %p107
    %p110 = scmp.ne.s32.totalorder %s95, %s109
    %p111 = scmp.eq.s32.totalorder %s17, 0
    %p112 = por %p110, %p111
    %s114 = sadd.s32 %s113, 1
    %p117 = scmp.eq.s32.totalorder %s11, 1
    %p118 = scmp.ne.s32.totalorder %s113, %s115
    %p119 = scmp.eq.s32.totalorder %s11, 0
    %p120 = por %p118, %p119
    %p121 = scmp.ne.s32.totalorder %s113, %s115
    %p122 = scmp.eq.s32.totalorder %s16, 1
    %p123 = por %p121, %p122
    %p124 = scmp.ne.s32.totalorder %s115, %s116
    %p125 = scmp.eq.s32.totalorder %s16, 0
    %p126 = por %p124, %p125
    %p127 = scmp.ne.s32.totalorder %s115, %s116
    %p128 = scmp.eq.s32.totalorder %s17, 1
    %p129 = por %p127, %p128
    %p131 = scmp.ne.s32.totalorder %s116, %s130
    %p132 = scmp.eq.s32.totalorder %s17, 0
    %p133 = por %p131, %p132
    %s134 = ssub.s32 %s11, %s18
    %p135 = scmp.eq.s32.totalorder %s134, 0
    %s137 = sadd.s32 %s136, 1
    %s138 = scalar_select %p135, %s136, %s137
    %p141 = pneg %p135
    %p142 = scmp.eq.s32.totalorder %s11, 1
    %p143 = por %p141, %p142
    %p144 = scmp.ne.s32.totalorder %s136, %s139
    %p145 = scmp.eq.s32.totalorder %s11, 0
    %p146 = por %p144, %p145
    %p147 = scmp.ne.s32.totalorder %s136, %s139
    %p148 = scmp.eq.s32.totalorder %s16, 1
    %p149 = por %p147, %p148
    %p150 = scmp.ne.s32.totalorder %s139, %s140
    %p151 = scmp.eq.s32.totalorder %s16, 0
    %p152 = por %p150, %p151
    %p153 = scmp.ne.s32.totalorder %s139, %s140
    %p154 = scmp.eq.s32.totalorder %s17, 1
    %p155 = por %p153, %p154
    %p157 = scmp.ne.s32.totalorder %s140, %s156
    %p158 = scmp.eq.s32.totalorder %s17, 0
    %p159 = por %p157, %p158
    %p160 = scmp.le.s32.totalorder 1, %s11
    %p161 = scmp.lt.s32.totalorder %s11, 3
    %p162 = pnand %p160, %p161
    %p163 = pneg %p162
    // Predicated region
    $region9: #{attention_forward.1} parent=5 // pred_check
      _
    $region10: #{attention_forward.1} parent=5 // pred_check_branch
      %165 = sbr.rel (%p162) target = $region12
    $region11: #{attention_forward.1} parent=5 // pred_region
      %s166 = ssub.s32 %s11, 1
      // Predicated region
      $region13: #{attention_forward.1} parent=11 // pred_check
        %p167 = pneg %p84
      $region14: #{attention_forward.1} parent=11 // pred_check_branch
        %169 = sbr.rel (%p167) target = $region16
      $region15: #{attention_forward.1} parent=11 // pred_region
        _
      $region16: #{attention_forward.1} parent=11 // pred_fallthru
        _
      // Predicated region
      $region17: #{attention_forward.1} parent=11 // pred_check
        %p170 = pneg %p105
      $region18: #{attention_forward.1} parent=11 // pred_check_branch
        %172 = sbr.rel (%p170) target = $region20
      $region19: #{attention_forward.1} parent=11 // pred_region
        _
      $region20: #{attention_forward.1} parent=11 // pred_fallthru
        _
      // Predicated region
      $region21: #{attention_forward.1} parent=11 // pred_check
        %p173 = pneg %p126
      $region22: #{attention_forward.1} parent=11 // pred_check_branch
        %175 = sbr.rel (%p173) target = $region24
      $region23: #{attention_forward.1} parent=11 // pred_region
        _
      $region24: #{attention_forward.1} parent=11 // pred_fallthru
        _
    $region12: #{attention_forward.1} parent=5 // pred_fallthru
      _
    %p176 = scmp.lt.s32.totalorder %s11, 2
    // Predicated region
    $region25: #{attention_forward.1} parent=5 // pred_check
      %p177 = pneg %p176
    $region26: #{attention_forward.1} parent=5 // pred_check_branch
      %179 = sbr.rel (%p177) target = $region28
    $region27: #{attention_forward.1} parent=5 // pred_region
      // Predicated region
      $region29: #{attention_forward.1} parent=27 // pred_check
        %p180 = pneg %p31
      $region30: #{attention_forward.1} parent=27 // pred_check_branch
        %182 = sbr.rel (%p180) target = $region32
      $region31: #{attention_forward.1} parent=27 // pred_region
        %s183 = smul.u32 2, %s11
        %p184 = scmp.lt.s32.totalorder %s183, 3
        %s185 = scalar_select %p184, %s183, 3
        %s186 = smul.addr %s185, 8
        %s187 = smul.addr %s186, 8
        %s188 = scalar_lea.vmem %s0, %s187
        %s189 = smul.u32 2, %s11
      $region32: #{attention_forward.1} parent=27 // pred_fallthru
        _
      // Predicated region
      $region33: #{attention_forward.1} parent=27 // pred_check
        %p190 = pneg %p57
      $region34: #{attention_forward.1} parent=27 // pred_check_branch
        %192 = sbr.rel (%p190) target = $region36
      $region35: #{attention_forward.1} parent=27 // pred_region
        %s193 = smul.u32 2, %s11
        %p194 = scmp.lt.s32.totalorder %s193, 3
        %s195 = scalar_select %p194, %s193, 3
        %s196 = smul.addr %s195, 4
        %s197 = smul.addr %s196, 8
        %s198 = scalar_lea.vmem %s1, %s197
        %s199 = smul.u32 2, %s11
      $region36: #{attention_forward.1} parent=27 // pred_fallthru
        _
    $region28: #{attention_forward.1} parent=5 // pred_fallthru
      _
    %p200 = scmp.le.s32.totalorder 1, %s11
    %p201 = scmp.lt.s32.totalorder %s11, 3
    %p202 = pnand %p200, %p201
    %p203 = pneg %p202
    // Predicated region
    $region37: #{attention_forward.1} parent=5 // pred_check
      _
    $region38: #{attention_forward.1} parent=5 // pred_check_branch
      %205 = sbr.rel (%p202) target = $region40
    $region39: #{attention_forward.1} parent=5 // pred_region
      %s206 = ssub.s32 %s11, 1
      %s207 = smul.u32 2, %s16
      %p208 = scmp.lt.s32.totalorder %s207, 3
      %s209 = scalar_select %p208, %s207, 3
      %s210 = smul.addr %s209, 8
      %s211 = smul.addr %s210, 8
      %s212 = scalar_lea.vmem %s0, %s211
      %p213 = pneg %p37
      %p214 = pneg %p34
      %s215 = smul.u32 2, %s16
      %p216 = scmp.lt.s32.totalorder %s215, 3
      %s217 = scalar_select %p216, %s215, 3
      %s218 = smul.addr %s217, 4
      %s219 = smul.addr %s218, 8
      %s220 = scalar_lea.vmem %s1, %s219
      %p221 = pneg %p63
      %p222 = pneg %p60
      %p223 = pneg %p84
      %p224 = pneg %p81
      %p225 = pneg %p105
      %p226 = pneg %p102
      %p227 = pneg %p126
      %p228 = pneg %p123
      %p229 = pneg %p152
      %p230 = pneg %p149
      %s231 = smul.u32 2, %s16
      %p232 = scmp.lt.s32.totalorder %s231, 3
      %s233 = scalar_select %p232, %s231, 3
      %s234 = smul.addr %s233, 2
      %s235 = smul.addr %s234, 2
      %s236 = scalar_lea.vmem %s5, %s235
      %s237 = smul.u32 2, %s16
      %p238 = scmp.lt.s32.totalorder %s237, 3
      %s239 = scalar_select %p238, %s237, 3
      %s240 = smul.addr %s239, 8
      %s241 = smul.addr %s240, 8
      %s242 = scalar_lea.vmem %s0, %s241
      %s243 = smul.u32 2, %s16
      %s244 = smul.u32 2, %s16
      %p245 = scmp.lt.s32.totalorder %s244, 3
      %s246 = scalar_select %p245, %s244, 3
      %s247 = smul.addr %s246, 4
      %s248 = smul.addr %s247, 8
      %s249 = scalar_lea.vmem %s1, %s248
      %s250 = smul.u32 2, %s16
      %s251 = smul.u32 2, %s16
      %p252 = scmp.lt.s32.totalorder %s251, 3
      %s253 = scalar_select %p252, %s251, 3
      %s254 = smul.addr %s253, 2
      %s255 = smul.addr %s254, 2
      %s256 = scalar_lea.vmem %s5, %s255
      %s257 = smul.u32 2, %s16
      %v258 = vld [vmem:[%s2] sm:$0xff]
      %v259 = vld [vmem:[%s2 + $0x8] sm:$0xff]
      %v260 = vld [vmem:[%s2 + $0x10] sm:$0xff]
      %v261 = vld [vmem:[%s2 + $0x18] sm:$0xff]
      %v262 = vld [vmem:[%s3] sm:$0x3]
      %v263 = vld [vmem:[%s4] sm:$0x3]
      %v264 = vld [vmem:[%s242] sm:$0xff]
      %v265 = vld [vmem:[%s242 + $0x8] sm:$0xff]
      %v266 = vld [vmem:[%s242 + $0x10] sm:$0xff]
      %v267 = vld [vmem:[%s242 + $0x18] sm:$0xff]
      %v268 = vld [vmem:[%s242 + $0x20] sm:$0xff]
      %v269 = vld [vmem:[%s242 + $0x28] sm:$0xff]
      %v270 = vld [vmem:[%s242 + $0x30] sm:$0xff]
      %v271 = vld [vmem:[%s242 + $0x38] sm:$0xff]
      %v272 = vld [vmem:[%s249] sm:$0xff]
      %v273 = vld [vmem:[%s249 + $0x8] sm:$0xff]
      %v274 = vld [vmem:[%s249 + $0x10] sm:$0xff]
      %v275 = vld [vmem:[%s249 + $0x18] sm:$0xff]
      %277 = vset.pattern.permute.xlu0 0
      %278 = vperm.xlu0 %277, %v272
      %v279 = vpop.permute.xlu0 %278
      %282 = vset.pattern.permute.xlu0 0
      %283 = vperm.xlu0 %282, %v273
      %v284 = vpop.permute.xlu0 %283
      %287 = vset.pattern.permute.xlu0 0
      %288 = vperm.xlu0 %287, %v274
      %v289 = vpop.permute.xlu0 %288
      %292 = vset.pattern.permute.xlu0 0
      %293 = vperm.xlu0 %292, %v275
      %v294 = vpop.permute.xlu0 %293
      %vm296 = vcmask 261120
      %v298 = vsel %vm296, %v258, 0
      %v301 = vsel %vm296, %v259, 0
      %v304 = vsel %vm296, %v260, 0
      %v307 = vsel %vm296, %v261, 0
      %309 = vmatprep.subr.mxu0 %v265
      %310 = vmatpush1.msra.mxu0 %v264
      %311 = vmatprep.subr.mxu0 %v267
      %312 = vmatpush1.msra.mxu0 %v266
      %313 = vmatprep.subr.mxu0 %v269
      %314 = vmatpush1.msra.mxu0 %v268
      %315 = vmatprep.subr.mxu0 %v271
      %316 = vmatpush1.msra.mxu0 %v270
      %317 = vmatprep.subr.mxu0 0.0
      %318 = vmatpush1.msra.mxu0 0.0
      %319 = vmatprep.subr.mxu0 0.0
      %320 = vmatpush1.msra.mxu0 0.0
      %321 = vmatprep.subr.mxu0 0.0
      %322 = vmatpush1.msra.mxu0 0.0
      %323 = vmatprep.subr.mxu0 0.0
      %324 = vmatpush1.msra.mxu0 0.0
      %325 = vmatprep.subr.mxu0 0.0
      %326 = vmatpush1.msra.mxu0 0.0
      %327 = vmatprep.subr.mxu0 0.0
      %328 = vmatpush1.msra.mxu0 0.0
      %329 = vmatprep.subr.mxu0 0.0
      %330 = vmatpush1.msra.mxu0 0.0
      %331 = vmatprep.subr.mxu0 0.0
      %332 = vmatpush1.msra.mxu0 0.0
      %333 = vmatprep.subr.mxu0 0.0
      %334 = vmatpush1.msra.mxu0 0.0
      %335 = vmatprep.subr.mxu0 0.0
      %336 = vmatpush1.msra.mxu0 0.0
      %337 = vmatprep.subr.mxu0 0.0
      %338 = vmatpush1.msra.mxu0 0.0
      %339 = vmatprep.subr.mxu0 0.0
      %340 = vmatpush1.msra.mxu0 0.0
      %341 = vmatprep.subr.mxu0 0.0
      %342 = vmatpush1.msra.mxu0 0.0
      %343 = vmatprep.subr.mxu0 0.0
      %344 = vmatpush1.msra.mxu0 0.0
      %345 = vmatprep.subr.mxu0 0.0
      %346 = vmatpush1.msra.mxu0 0.0
      %347 = vmatprep.subr.mxu0 0.0
      %348 = vmatpush1.msra.mxu0 0.0
      %349 = vmatprep.subr.mxu0 0.0
      %350 = vmatpush1.msra.mxu0 0.0
      %351 = vmatprep.subr.mxu0 0.0
      %352 = vmatpush1.msra.mxu0 0.0
      %353 = vmatprep.subr.mxu0 0.0
      %354 = vmatpush1.msra.mxu0 0.0
      %355 = vmatprep.subr.mxu0 0.0
      %356 = vmatpush1.msra.mxu0 0.0
      %357 = vmatprep.subr.mxu0 0.0
      %358 = vmatpush1.msra.mxu0 0.0
      %359 = vmatprep.subr.mxu0 0.0
      %360 = vmatpush1.msra.mxu0 0.0
      %361 = vmatprep.subr.mxu0 0.0
      %362 = vmatpush1.msra.mxu0 0.0
      %363 = vmatprep.subr.mxu0 0.0
      %364 = vmatpush1.msra.mxu0 0.0
      %365 = vmatprep.subr.mxu0 0.0
      %366 = vmatpush1.msra.mxu0 0.0
      %367 = vmatprep.subr.mxu0 0.0
      %368 = vmatpush1.msra.mxu0 0.0
      %369 = vmatprep.subr.mxu0 0.0
      %370 = vmatpush1.msra.mxu0 0.0
      %371 = vmatprep.subr.mxu0 0.0
      %372 = vmatpush1.msra.mxu0 0.0
      %373 = vmatprep.mubr.f32.mxu0 0.0
      %374 = vmatmul.mubr.f32.gmra.mrb[0].mxu0 %v298
      %v375 = vpop.f32.mrb[0].mxu0
      %v376 = vadd.f32 %v279, %v375
      %v377 = vpop.f32.mrb[0].mxu0
      %v378 = vadd.f32 %v279, %v377
      %379 = vmatprep.mubr.f32.mxu0 0.0
      %380 = vmatmul.mubr.f32.gmra.mrb[0].mxu0 %v301
      %v381 = vpop.f32.mrb[0].mxu0
      %v382 = vadd.f32 %v284, %v381
      %v383 = vpop.f32.mrb[0].mxu0
      %v384 = vadd.f32 %v284, %v383
      %385 = vmatprep.mubr.f32.mxu0 0.0
      %386 = vmatmul.mubr.f32.gmra.mrb[0].mxu0 %v304
      %v387 = vpop.f32.mrb[0].mxu0
      %v388 = vadd.f32 %v289, %v387
      %v389 = vpop.f32.mrb[0].mxu0
      %v390 = vadd.f32 %v289, %v389
      %391 = vmatprep.mubr.f32.mxu0 0.0
      %392 = vmatmul.mubr.f32.gmra.mrb[0].mxu0 %v307
      %v393 = vpop.f32.mrb[0].mxu0
      %v394 = vadd.f32 %v294, %v393
      %v395 = vpop.f32.mrb[0].mxu0
      %v396 = vadd.f32 %v294, %v395
      %397 = vdwg.mxu0
      %v398 = vmax.f32 %v376, 0.0
      %v399 = vmax.f32 %v378, 0.0
      %v400 = vmax.f32 %v382, 0.0
      %v401 = vmax.f32 %v384, 0.0
      %v402 = vmax.f32 %v388, 0.0
      %v403 = vmax.f32 %v390, 0.0
      %v404 = vmax.f32 %v394, 0.0
      %v405 = vmax.f32 %v396, 0.0
      %407 = vset.pattern.permute.xlu0 0
      %408 = vperm.xlu0 %407, %v263
      %v409 = vpop.permute.xlu0 %408
      %v412 = vsel %vm296, %v262, 0
      %414 = vmatprep.subr.mxu0 %v399
      %415 = vmatpush1.msra.mxu0 %v398
      %416 = vmatprep.subr.mxu0 %v401
      %417 = vmatpush1.msra.mxu0 %v400
      %418 = vmatprep.subr.mxu0 %v403
      %419 = vmatpush1.msra.mxu0 %v402
      %420 = vmatprep.subr.mxu0 %v405
      %421 = vmatpush1.msra.mxu0 %v404
      %422 = vmatprep.subr.mxu0 0.0
      %423 = vmatpush1.msra.mxu0 0.0
      %424 = vmatprep.subr.mxu0 0.0
      %425 = vmatpush1.msra.mxu0 0.0
      %426 = vmatprep.subr.mxu0 0.0
      %427 = vmatpush1.msra.mxu0 0.0
      %428 = vmatprep.subr.mxu0 0.0
      %429 = vmatpush1.msra.mxu0 0.0
      %430 = vmatprep.subr.mxu0 0.0
      %431 = vmatpush1.msra.mxu0 0.0
      %432 = vmatprep.subr.mxu0 0.0
      %433 = vmatpush1.msra.mxu0 0.0
      %434 = vmatprep.subr.mxu0 0.0
      %435 = vmatpush1.msra.mxu0 0.0
      %436 = vmatprep.subr.mxu0 0.0
      %437 = vmatpush1.msra.mxu0 0.0
      %438 = vmatprep.subr.mxu0 0.0
      %439 = vmatpush1.msra.mxu0 0.0
      %440 = vmatprep.subr.mxu0 0.0
      %441 = vmatpush1.msra.mxu0 0.0
      %442 = vmatprep.subr.mxu0 0.0
      %443 = vmatpush1.msra.mxu0 0.0
      %444 = vmatprep.subr.mxu0 0.0
      %445 = vmatpush1.msra.mxu0 0.0
      %446 = vmatprep.subr.mxu0 0.0
      %447 = vmatpush1.msra.mxu0 0.0
      %448 = vmatprep.subr.mxu0 0.0
      %449 = vmatpush1.msra.mxu0 0.0
      %450 = vmatprep.subr.mxu0 0.0
      %451 = vmatpush1.msra.mxu0 0.0
      %452 = vmatprep.subr.mxu0 0.0
      %453 = vmatpush1.msra.mxu0 0.0
      %454 = vmatprep.subr.mxu0 0.0
      %455 = vmatpush1.msra.mxu0 0.0
      %456 = vmatprep.subr.mxu0 0.0
      %457 = vmatpush1.msra.mxu0 0.0
      %458 = vmatprep.subr.mxu0 0.0
      %459 = vmatpush1.msra.mxu0 0.0
      %460 = vmatprep.subr.mxu0 0.0
      %461 = vmatpush1.msra.mxu0 0.0
      %462 = vmatprep.subr.mxu0 0.0
      %463 = vmatpush1.msra.mxu0 0.0
      %464 = vmatprep.subr.mxu0 0.0
      %465 = vmatpush1.msra.mxu0 0.0
      %466 = vmatprep.subr.mxu0 0.0
      %467 = vmatpush1.msra.mxu0 0.0
      %468 = vmatprep.subr.mxu0 0.0
      %469 = vmatpush1.msra.mxu0 0.0
      %470 = vmatprep.subr.mxu0 0.0
      %471 = vmatpush1.msra.mxu0 0.0
      %472 = vmatprep.subr.mxu0 0.0
      %473 = vmatpush1.msra.mxu0 0.0
      %474 = vmatprep.subr.mxu0 0.0
      %475 = vmatpush1.msra.mxu0 0.0
      %476 = vmatprep.subr.mxu0 0.0
      %477 = vmatpush1.msra.mxu0 0.0
      %478 = vmatprep.mubr.f32.mxu0 0.0
      %479 = vmatmul.mubr.f32.gmra.mrb[0].mxu0 %v412
      %v480 = vpop.f32.mrb[0].mxu0
      %v481 = vadd.f32 %v409, %v480
      %v482 = vpop.f32.mrb[0].mxu0
      %v483 = vadd.f32 %v409, %v482
      %484 = vdwg.mxu0
      %v487 = vcombine.low %v481, %v483
      %v489 = vunpack.c.l.s4 1983009808
      %v490 = vunpack.c.0.s8 %v489
      %v491 = vlaneseq
      %v492 = vshrl.u32 %v491, 7
      %v493 = vsub.s32 %v490, %v492
      %v494 = vrot.slane %v487, %v493
      %496 = vst [vmem:[%s256] sm:$0xf] %v494
      %s497 = scalar_lea.vmem %s242, 64
      %v498 = vld [vmem:[%s497] sm:$0xff]
      %v499 = vld [vmem:[%s497 + $0x8] sm:$0xff]
      %v500 = vld [vmem:[%s497 + $0x10] sm:$0xff]
      %v501 = vld [vmem:[%s497 + $0x18] sm:$0xff]
      %v502 = vld [vmem:[%s497 + $0x20] sm:$0xff]
      %v503 = vld [vmem:[%s497 + $0x28] sm:$0xff]
      %v504 = vld [vmem:[%s497 + $0x30] sm:$0xff]
      %v505 = vld [vmem:[%s497 + $0x38] sm:$0xff]
      %s506 = scalar_lea.vmem %s249, 32
      %v507 = vld [vmem:[%s506] sm:$0xff]
      %v508 = vld [vmem:[%s506 + $0x8] sm:$0xff]
      %v509 = vld [vmem:[%s506 + $0x10] sm:$0xff]
      %v510 = vld [vmem:[%s506 + $0x18] sm:$0xff]
      %512 = vset.pattern.permute.xlu0 0
      %513 = vperm.xlu0 %512, %v507
      %v514 = vpop.permute.xlu0 %513
      %517 = vset.pattern.permute.xlu0 0
      %518 = vperm.xlu0 %517, %v508
      %v519 = vpop.permute.xlu0 %518
      %522 = vset.pattern.permute.xlu0 0
      %523 = vperm.xlu0 %522, %v509
      %v524 = vpop.permute.xlu0 %523
      %527 = vset.pattern.permute.xlu0 0
      %528 = vperm.xlu0 %527, %v510
      %v529 = vpop.permute.xlu0 %528
      %531 = vmatprep.subr.mxu0 %v499
      %532 = vmatpush1.msra.mxu0 %v498
      %533 = vmatprep.subr.mxu0 %v501
      %534 = vmatpush1.msra.mxu0 %v500
      %535 = vmatprep.subr.mxu0 %v503
      %536 = vmatpush1.msra.mxu0 %v502
      %537 = vmatprep.subr.mxu0 %v505
      %538 = vmatpush1.msra.mxu0 %v504
      %539 = vmatprep.subr.mxu0 0.0
      %540 = vmatpush1.msra.mxu0 0.0
      %541 = vmatprep.subr.mxu0 0.0
      %542 = vmatpush1.msra.mxu0 0.0
      %543 = vmatprep.subr.mxu0 0.0
      %544 = vmatpush1.msra.mxu0 0.0
      %545 = vmatprep.subr.mxu0 0.0
      %546 = vmatpush1.msra.mxu0 0.0
      %547 = vmatprep.subr.mxu0 0.0
      %548 = vmatpush1.msra.mxu0 0.0
      %549 = vmatprep.subr.mxu0 0.0
      %550 = vmatpush1.msra.mxu0 0.0
      %551 = vmatprep.subr.mxu0 0.0
      %552 = vmatpush1.msra.mxu0 0.0
      %553 = vmatprep.subr.mxu0 0.0
      %554 = vmatpush1.msra.mxu0 0.0
      %555 = vmatprep.subr.mxu0 0.0
      %556 = vmatpush1.msra.mxu0 0.0
      %557 = vmatprep.subr.mxu0 0.0
      %558 = vmatpush1.msra.mxu0 0.0
      %559 = vmatprep.subr.mxu0 0.0
      %560 = vmatpush1.msra.mxu0 0.0
      %561 = vmatprep.subr.mxu0 0.0
      %562 = vmatpush1.msra.mxu0 0.0
      %563 = vmatprep.subr.mxu0 0.0
      %564 = vmatpush1.msra.mxu0 0.0
      %565 = vmatprep.subr.mxu0 0.0
      %566 = vmatpush1.msra.mxu0 0.0
      %567 = vmatprep.subr.mxu0 0.0
      %568 = vmatpush1.msra.mxu0 0.0
      %569 = vmatprep.subr.mxu0 0.0
      %570 = vmatpush1.msra.mxu0 0.0
      %571 = vmatprep.subr.mxu0 0.0
      %572 = vmatpush1.msra.mxu0 0.0
      %573 = vmatprep.subr.mxu0 0.0
      %574 = vmatpush1.msra.mxu0 0.0
      %575 = vmatprep.subr.mxu0 0.0
      %576 = vmatpush1.msra.mxu0 0.0
      %577 = vmatprep.subr.mxu0 0.0
      %578 = vmatpush1.msra.mxu0 0.0
      %579 = vmatprep.subr.mxu0 0.0
      %580 = vmatpush1.msra.mxu0 0.0
      %581 = vmatprep.subr.mxu0 0.0
      %582 = vmatpush1.msra.mxu0 0.0
      %583 = vmatprep.subr.mxu0 0.0
      %584 = vmatpush1.msra.mxu0 0.0
      %585 = vmatprep.subr.mxu0 0.0
      %586 = vmatpush1.msra.mxu0 0.0
      %587 = vmatprep.subr.mxu0 0.0
      %588 = vmatpush1.msra.mxu0 0.0
      %589 = vmatprep.subr.mxu0 0.0
      %590 = vmatpush1.msra.mxu0 0.0
      %591 = vmatprep.subr.mxu0 0.0
      %592 = vmatpush1.msra.mxu0 0.0
      %593 = vmatprep.subr.mxu0 0.0
      %594 = vmatpush1.msra.mxu0 0.0
      %595 = vmatprep.mubr.f32.mxu0 0.0
      %596 = vmatmul.mubr.f32.gmra.mrb[0].mxu0 %v298
      %v597 = vpop.f32.mrb[0].mxu0
      %v598 = vadd.f32 %v514, %v597
      %v599 = vpop.f32.mrb[0].mxu0
      %v600 = vadd.f32 %v514, %v599
      %601 = vmatprep.mubr.f32.mxu0 0.0
      %602 = vmatmul.mubr.f32.gmra.mrb[0].mxu0 %v301
      %v603 = vpop.f32.mrb[0].mxu0
      %v604 = vadd.f32 %v519, %v603
      %v605 = vpop.f32.mrb[0].mxu0
      %v606 = vadd.f32 %v519, %v605
      %607 = vmatprep.mubr.f32.mxu0 0.0
      %608 = vmatmul.mubr.f32.gmra.mrb[0].mxu0 %v304
      %v609 = vpop.f32.mrb[0].mxu0
      %v610 = vadd.f32 %v524, %v609
      %v611 = vpop.f32.mrb[0].mxu0
      %v612 = vadd.f32 %v524, %v611
      %613 = vmatprep.mubr.f32.mxu0 0.0
      %614 = vmatmul.mubr.f32.gmra.mrb[0].mxu0 %v307
      %v615 = vpop.f32.mrb[0].mxu0
      %v616 = vadd.f32 %v529, %v615
      %v617 = vpop.f32.mrb[0].mxu0
      %v618 = vadd.f32 %v529, %v617
      %619 = vdwg.mxu0
      %v620 = vmax.f32 %v598, 0.0
      %v621 = vmax.f32 %v600, 0.0
      %v622 = vmax.f32 %v604, 0.0
      %v623 = vmax.f32 %v606, 0.0
      %v624 = vmax.f32 %v610, 0.0
      %v625 = vmax.f32 %v612, 0.0
      %v626 = vmax.f32 %v616, 0.0
      %v627 = vmax.f32 %v618, 0.0
      %628 = vmatprep.subr.mxu0 %v621
      %629 = vmatpush1.msra.mxu0 %v620
      %630 = vmatprep.subr.mxu0 %v623
      %631 = vmatpush1.msra.mxu0 %v622
      %632 = vmatprep.subr.mxu0 %v625
      %633 = vmatpush1.msra.mxu0 %v624
      %634 = vmatprep.subr.mxu0 %v627
      %635 = vmatpush1.msra.mxu0 %v626
      %636 = vmatprep.subr.mxu0 0.0
      %637 = vmatpush1.msra.mxu0 0.0
      %638 = vmatprep.subr.mxu0 0.0
      %639 = vmatpush1.msra.mxu0 0.0
      %640 = vmatprep.subr.mxu0 0.0
      %641 = vmatpush1.msra.mxu0 0.0
      %642 = vmatprep.subr.mxu0 0.0
      %643 = vmatpush1.msra.mxu0 0.0
      %644 = vmatprep.subr.mxu0 0.0
      %645 = vmatpush1.msra.mxu0 0.0
      %646 = vmatprep.subr.mxu0 0.0
      %647 = vmatpush1.msra.mxu0 0.0
      %648 = vmatprep.subr.mxu0 0.0
      %649 = vmatpush1.msra.mxu0 0.0
      %650 = vmatprep.subr.mxu0 0.0
      %651 = vmatpush1.msra.mxu0 0.0
      %652 = vmatprep.subr.mxu0 0.0
      %653 = vmatpush1.msra.mxu0 0.0
      %654 = vmatprep.subr.mxu0 0.0
      %655 = vmatpush1.msra.mxu0 0.0
      %656 = vmatprep.subr.mxu0 0.0
      %657 = vmatpush1.msra.mxu0 0.0
      %658 = vmatprep.subr.mxu0 0.0
      %659 = vmatpush1.msra.mxu0 0.0
      %660 = vmatprep.subr.mxu0 0.0
      %661 = vmatpush1.msra.mxu0 0.0
      %662 = vmatprep.subr.mxu0 0.0
      %663 = vmatpush1.msra.mxu0 0.0
      %664 = vmatprep.subr.mxu0 0.0
      %665 = vmatpush1.msra.mxu0 0.0
      %666 = vmatprep.subr.mxu0 0.0
      %667 = vmatpush1.msra.mxu0 0.0
      %668 = vmatprep.subr.mxu0 0.0
      %669 = vmatpush1.msra.mxu0 0.0
      %670 = vmatprep.subr.mxu0 0.0
      %671 = vmatpush1.msra.mxu0 0.0
      %672 = vmatprep.subr.mxu0 0.0
      %673 = vmatpush1.msra.mxu0 0.0
      %674 = vmatprep.subr.mxu0 0.0
      %675 = vmatpush1.msra.mxu0 0.0
      %676 = vmatprep.subr.mxu0 0.0
      %677 = vmatpush1.msra.mxu0 0.0
      %678 = vmatprep.subr.mxu0 0.0
      %679 = vmatpush1.msra.mxu0 0.0
      %680 = vmatprep.subr.mxu0 0.0
      %681 = vmatpush1.msra.mxu0 0.0
      %682 = vmatprep.subr.mxu0 0.0
      %683 = vmatpush1.msra.mxu0 0.0
      %684 = vmatprep.subr.mxu0 0.0
      %685 = vmatpush1.msra.mxu0 0.0
      %686 = vmatprep.subr.mxu0 0.0
      %687 = vmatpush1.msra.mxu0 0.0
      %688 = vmatprep.subr.mxu0 0.0
      %689 = vmatpush1.msra.mxu0 0.0
      %690 = vmatprep.subr.mxu0 0.0
      %691 = vmatpush1.msra.mxu0 0.0
      %692 = vmatprep.mubr.f32.mxu0 0.0
      %693 = vmatmul.mubr.f32.gmra.mrb[0].mxu0 %v412
      %v694 = vpop.f32.mrb[0].mxu0
      %v695 = vadd.f32 %v409, %v694
      %v696 = vpop.f32.mrb[0].mxu0
      %v697 = vadd.f32 %v409, %v696
      %698 = vdwg.mxu0
      %v701 = vcombine.low %v695, %v697
      %v703 = vunpack.c.l.s4 1983009808
      %v704 = vunpack.c.0.s8 %v703
      %v705 = vlaneseq
      %v706 = vshrl.u32 %v705, 7
      %v707 = vsub.s32 %v704, %v706
      %v708 = vrot.slane %v701, %v707
      %s710 = scalar_lea.vmem %s256, 4
      %711 = vst [vmem:[%s710] sm:$0xf] %v708
      %s712 = smul.u32 2, %s16
      %p713 = scmp.lt.s32.totalorder %s712, 3
      %s714 = scalar_select %p713, %s712, 3
      %s715 = smul.addr %s714, 2
      %s716 = smul.addr %s715, 2
      %s717 = scalar_lea.vmem %s5, %s716
      // Predicated region
      $region41: #{attention_forward.1} parent=39 // pred_check
        %p718 = pneg %p149
      $region42: #{attention_forward.1} parent=39 // pred_check_branch
        %720 = sbr.rel (%p718) target = $region44
      $region43: #{attention_forward.1} parent=39 // pred_region
        %s721 = smul.u32 2, %s16
      $region44: #{attention_forward.1} parent=39 // pred_fallthru
        _
    $region40: #{attention_forward.1} parent=5 // pred_fallthru
      _
    %p722 = scmp.le.s32.totalorder 2, %s11
    // Predicated region
    $region45: #{attention_forward.1} parent=5 // pred_check
      %p723 = pneg %p722
    $region46: #{attention_forward.1} parent=5 // pred_check_branch
      %725 = sbr.rel (%p723) target = $region48
    $region47: #{attention_forward.1} parent=5 // pred_region
      %s726 = ssub.s32 %s11, 2
      // Predicated region
      $region49: #{attention_forward.1} parent=47 // pred_check
        %p727 = pneg %p155
      $region50: #{attention_forward.1} parent=47 // pred_check_branch
        %729 = sbr.rel (%p727) target = $region52
      $region51: #{attention_forward.1} parent=47 // pred_region
        %s730 = smul.u32 2, %s17
        %p731 = scmp.lt.s32.totalorder %s730, 3
        %s732 = scalar_select %p731, %s730, 3
        %s733 = smul.addr %s732, 2
        %s734 = smul.addr %s733, 2
        %s735 = scalar_lea.vmem %s5, %s734
      $region52: #{attention_forward.1} parent=47 // pred_fallthru
        _
    $region48: #{attention_forward.1} parent=5 // pred_fallthru
      _
  $region6: #{attention_forward.1} parent=0 // loop_footer
    %s15 = sadd.s32 1, %s11
  $region7: #{attention_forward.1} parent=0 // loop_footer_branch
    %10 = sbr.rel target = $region3
  $region8: #{attention_forward.1} parent=0 // loop_exit
    _

</llo_original>
